<compile_context>
chip_gen: v5e
topology: v5e:2x2
jax: 0.10.0
libtpu: 0.0.40
codegen_flags: <defaults>
</compile_context>

<pallas_src>
import functools

import jax
import jax.numpy as jnp
from jax.experimental import pallas as pl
from jax.experimental.pallas import tpu as pltpu

K = 9                  # kernel width of the first Conv1d
PAD = (K - 1) // 2     # 4
TL_MAX = 512           # L-tile cap: multiple of 128, keeps VMEM modest even on v7x (64 MiB)


def ffn_kernel(xp_ref, xc_ref, xn_ref, w1_ref, b1_ref, w2_ref, b2_ref,
               o_ref, h_ref, *, seq_len):
    """One (batch, L-tile) grid step.

    xp/xc/xn_ref : (1, C_in, TL) bf16  previous / current / next L-tile of x (clamped at edges)
    w1_ref       : (H, K*C_in)   bf16  conv1 weights, column index = k*C_in + c
    b1_ref       : (H, 1)        f32
    w2_ref       : (C_out, H)    bf16  1x1 conv == plain matmul
    b2_ref       : (C_out, 1)    f32
    o_ref        : (1, C_out, TL)
    h_ref        : (H, TL)       bf16 VMEM scratch for the hidden activation
    """
    lt = pl.program_id(1)
    TL = o_ref.shape[2]

    # Halo window covering global columns [lt*TL - PAD, lt*TL + TL + PAD).
    # (Assembled in f32 so sublane concatenation stays 8-row aligned; cast back before the dot.)
    prev = xp_ref[0].astype(jnp.float32)
    cur = xc_ref[0].astype(jnp.float32)
    nxt = xn_ref[0].astype(jnp.float32)
    window = jnp.concatenate([prev[:, TL - PAD:], cur, nxt[:, :PAD]], axis=1)

    # Fold the conv zero-padding (and any partial-tile overhang) into an in-kernel mask.
    gpos = lt * TL - PAD + jax.lax.broadcasted_iota(jnp.int32, window.shape, 1)
    window = jnp.where((gpos >= 0) & (gpos < seq_len), window, 0.0)

    # im2col: one (K*C_in, TL) operand -> a single MXU dot with contraction depth K*C_in.
    xcol = jnp.concatenate([window[:, k:k + TL] for k in range(K)], axis=0)
    xcol = xcol.astype(w1_ref.dtype)

    acc = jnp.dot(w1_ref[...], xcol, preferred_element_type=jnp.float32)     # (H, TL) f32
    h_ref[...] = jnp.maximum(acc + b1_ref[...], 0.0).astype(h_ref.dtype)     # bias + ReLU

    # TODO(synk): nn.Dropout is identity at inference; no RNG mask applied here.

    out = jnp.dot(w2_ref[...], h_ref[...], preferred_element_type=jnp.float32) + b2_ref[...]
    o_ref[0] = out.astype(o_ref.dtype)


def feed_forward_network(x_ncl, w1_oik, b1, w2_oik, b2, *, compute_dtype=jnp.bfloat16):
    """x_ncl: (B, C_in, L) like PyTorch. Weights in PyTorch Conv1d layout (O, I, K)."""
    B, C_in, L = x_ncl.shape
    H = w1_oik.shape[0]
    C_out = w2_oik.shape[0]
    assert w1_oik.shape == (H, C_in, K) and w2_oik.shape == (C_out, H, 1)

    TL = L if L <= TL_MAX else TL_MAX
    assert TL >= PAD, "sequence too short for this tiling"
    nL = pl.cdiv(L, TL)

    # One-time weight re-layout: conv1 -> (H, K*C_in) with column index k*C_in + c.
    w1_mat = jnp.transpose(w1_oik, (0, 2, 1)).reshape(H, K * C_in).astype(compute_dtype)
    w2_mat = w2_oik[:, :, 0].astype(compute_dtype)
    b1_col = b1.reshape(H, 1).astype(jnp.float32)
    b2_col = b2.reshape(C_out, 1).astype(jnp.float32)
    x_c = x_ncl.astype(compute_dtype)

    kernel = functools.partial(ffn_kernel, seq_len=L)
    x_blk = (1, C_in, TL)

    return pl.pallas_call(
        kernel,
        out_shape=jax.ShapeDtypeStruct((B, C_out, L), x_ncl.dtype),
        grid_spec=pltpu.PrefetchScalarGridSpec(
            num_scalar_prefetch=0,
            grid=(B, nL),
            in_specs=[
                pl.BlockSpec(x_blk, lambda b, l: (b, 0, jnp.maximum(l - 1, 0))),       # prev tile
                pl.BlockSpec(x_blk, lambda b, l: (b, 0, l)),                           # current
                pl.BlockSpec(x_blk, lambda b, l: (b, 0, jnp.minimum(l + 1, nL - 1))),  # next tile
                pl.BlockSpec((H, K * C_in), lambda b, l: (0, 0)),
                pl.BlockSpec((H, 1), lambda b, l: (0, 0)),
                pl.BlockSpec((C_out, H), lambda b, l: (0, 0)),
                pl.BlockSpec((C_out, 1), lambda b, l: (0, 0)),
            ],
            out_specs=pl.BlockSpec((1, C_out, TL), lambda b, l: (b, 0, l)),
            scratch_shapes=[pltpu.VMEM((H, TL), compute_dtype)],
        ),
        compiler_params=pltpu.CompilerParams(
            dimension_semantics=("parallel", "parallel"),
        ),
    )(x_c, x_c, x_c, w1_mat, b1_col, w2_mat, b2_col)


def _reference(x_ncl, w1_oik, b1, w2_oik, b2):
    """Pure-JAX f32 reference matching PyTorch Conv1d semantics (eval mode)."""
    y = jax.lax.conv_general_dilated(
        x_ncl, w1_oik, window_strides=(1,), padding=[(PAD, PAD)],
        dimension_numbers=("NCH", "OIH", "NCH"),
    ) + b1[None, :, None]
    y = jnp.maximum(y, 0.0)
    y = jax.lax.conv_general_dilated(
        y, w2_oik, window_strides=(1,), padding=[(0, 0)],
        dimension_numbers=("NCH", "OIH", "NCH"),
    ) + b2[None, :, None]
    return y


if __name__ == "__main__":
    # Small, deterministic setup: in_dim=8, hidden_dim=32, out_dim=8, dropout=0.1 (identity at eval).
    B, IN_DIM, HIDDEN, OUT_DIM, L = 2, 8, 32, 8, 16

    key = jax.random.PRNGKey(0)
    kx, kw1, kb1, kw2, kb2 = jax.random.split(key, 5)

    x = jax.random.normal(kx, (B, IN_DIM, L), dtype=jnp.float32)
    w1 = jax.random.normal(kw1, (HIDDEN, IN_DIM, K), dtype=jnp.float32) * 0.1
    b1 = jax.random.normal(kb1, (HIDDEN,), dtype=jnp.float32) * 0.1
    w2 = jax.random.normal(kw2, (OUT_DIM, HIDDEN, 1), dtype=jnp.float32) * 0.1
    b2 = jax.random.normal(kb2, (OUT_DIM,), dtype=jnp.float32) * 0.1

    out = feed_forward_network(x, w1, b1, w2, b2)
    out = jax.block_until_ready(out)

    ref = _reference(x, w1, b1, w2, b2)
    assert out.shape == (B, OUT_DIM, L)
    # bf16 inputs + f32 accumulation -> relaxed tolerance vs the f32 reference.
    assert jnp.allclose(out, ref, atol=5e-2, rtol=5e-2), "mismatch vs reference"

    print("KERNEL_OK")
</pallas_src>

<mosaic_0001>
module attributes {stable_mosaic.version = 11 : i64} {
  func.func @ffn_kernel(%arg0: i32, %arg1: i32, %arg2: memref<1x8x16xbf16, #tpu.memory_space<vmem>>, %arg3: memref<1x8x16xbf16, #tpu.memory_space<vmem>>, %arg4: memref<1x8x16xbf16, #tpu.memory_space<vmem>>, %arg5: memref<32x72xbf16, #tpu.memory_space<vmem>>, %arg6: memref<32x1xf32, #tpu.memory_space<vmem>>, %arg7: memref<8x32xbf16, #tpu.memory_space<vmem>>, %arg8: memref<8x1xf32, #tpu.memory_space<vmem>>, %arg9: memref<1x8x16xf32, #tpu.memory_space<vmem>>, %arg10: memref<32x16xbf16, #tpu.memory_space<vmem>>) attributes {dimension_semantics = [#tpu.dimension_semantics<parallel>, #tpu.dimension_semantics<parallel>], iteration_bounds = array<i64: 2, 1>, scalar_prefetch = 0 : i64, scratch_operands = 1 : i64, tpu.core_type = #tpu.core_type<tc>, window_params = [{transform_indices = @transform_0, window_bounds = array<i64: 1, 8, 16>}, {transform_indices = @transform_1, window_bounds = array<i64: 1, 8, 16>}, {transform_indices = @transform_2, window_bounds = array<i64: 1, 8, 16>}, {pipeline_mode = #tpu.pipeline_mode<synchronous>, transform_indices = @transform_3, window_bounds = array<i64: 32, 72>}, {pipeline_mode = #tpu.pipeline_mode<synchronous>, transform_indices = @transform_4, window_bounds = array<i64: 32, 1>}, {pipeline_mode = #tpu.pipeline_mode<synchronous>, transform_indices = @transform_5, window_bounds = array<i64: 8, 32>}, {pipeline_mode = #tpu.pipeline_mode<synchronous>, transform_indices = @transform_6, window_bounds = array<i64: 8, 1>}, {transform_indices = @transform_7, window_bounds = array<i64: 1, 8, 16>}]} {
    %c0 = arith.constant 0 : index
    %c0_0 = arith.constant 0 : index
    %c0_1 = arith.constant 0 : index
    %0 = vector.load %arg2[%c0, %c0_0, %c0_1] : memref<1x8x16xbf16, #tpu.memory_space<vmem>>, vector<1x8x16xbf16>
    %1 = vector.shape_cast %0 : vector<1x8x16xbf16> to vector<8x16xbf16>
    %2 = arith.extf %1 : vector<8x16xbf16> to vector<8x16xf32>
    %c0_2 = arith.constant 0 : index
    %c0_3 = arith.constant 0 : index
    %c0_4 = arith.constant 0 : index
    %3 = vector.load %arg3[%c0_2, %c0_3, %c0_4] : memref<1x8x16xbf16, #tpu.memory_space<vmem>>, vector<1x8x16xbf16>
    %4 = vector.shape_cast %3 : vector<1x8x16xbf16> to vector<8x16xbf16>
    %5 = arith.extf %4 : vector<8x16xbf16> to vector<8x16xf32>
    %c0_5 = arith.constant 0 : index
    %c0_6 = arith.constant 0 : index
    %c0_7 = arith.constant 0 : index
    %6 = vector.load %arg4[%c0_5, %c0_6, %c0_7] : memref<1x8x16xbf16, #tpu.memory_space<vmem>>, vector<1x8x16xbf16>
    %7 = vector.shape_cast %6 : vector<1x8x16xbf16> to vector<8x16xbf16>
    %8 = arith.extf %7 : vector<8x16xbf16> to vector<8x16xf32>
    %9 = vector.extract_strided_slice %2 {offsets = [0, 12], sizes = [8, 4], strides = [1, 1]} : vector<8x16xf32> to vector<8x4xf32>
    %10 = vector.extract_strided_slice %8 {offsets = [0, 0], sizes = [8, 4], strides = [1, 1]} : vector<8x16xf32> to vector<8x4xf32>
    %11 = tpu.concatenate %9, %5, %10 in 1 : vector<8x4xf32>, vector<8x16xf32>, vector<8x4xf32> -> vector<8x24xf32>
    %c16_i32 = arith.constant 16 : i32
    %12 = arith.muli %arg1, %c16_i32 : i32
    %c4_i32 = arith.constant 4 : i32
    %13 = arith.subi %12, %c4_i32 : i32
    %14 = tpu.iota {dimensions = array<i32: 1>} : vector<8x24xi32>
    %15 = vector.broadcast %13 : i32 to vector<8x24xi32>
    %16 = arith.addi %15, %14 : vector<8x24xi32>
    %c0_i32 = arith.constant 0 : i32
    %17 = vector.broadcast %c0_i32 : i32 to vector<8x24xi32>
    %18 = arith.cmpi sge, %16, %17 : vector<8x24xi32>
    %c16_i32_8 = arith.constant 16 : i32
    %19 = vector.broadcast %c16_i32_8 : i32 to vector<8x24xi32>
    %20 = arith.cmpi slt, %16, %19 : vector<8x24xi32>
    %21 = arith.andi %18, %20 : vector<8x24xi1>
    %cst = arith.constant 0.000000e+00 : f32
    %22 = vector.broadcast %cst : f32 to vector<8x24xf32>
    %23 = arith.select %21, %11, %22 : vector<8x24xi1>, vector<8x24xf32>
    %24 = vector.extract_strided_slice %23 {offsets = [0, 0], sizes = [8, 16], strides = [1, 1]} : vector<8x24xf32> to vector<8x16xf32>
    %25 = vector.extract_strided_slice %23 {offsets = [0, 1], sizes = [8, 16], strides = [1, 1]} : vector<8x24xf32> to vector<8x16xf32>
    %26 = vector.extract_strided_slice %23 {offsets = [0, 2], sizes = [8, 16], strides = [1, 1]} : vector<8x24xf32> to vector<8x16xf32>
    %27 = vector.extract_strided_slice %23 {offsets = [0, 3], sizes = [8, 16], strides = [1, 1]} : vector<8x24xf32> to vector<8x16xf32>
    %28 = vector.extract_strided_slice %23 {offsets = [0, 4], sizes = [8, 16], strides = [1, 1]} : vector<8x24xf32> to vector<8x16xf32>
    %29 = vector.extract_strided_slice %23 {offsets = [0, 5], sizes = [8, 16], strides = [1, 1]} : vector<8x24xf32> to vector<8x16xf32>
    %30 = vector.extract_strided_slice %23 {offsets = [0, 6], sizes = [8, 16], strides = [1, 1]} : vector<8x24xf32> to vector<8x16xf32>
    %31 = vector.extract_strided_slice %23 {offsets = [0, 7], sizes = [8, 16], strides = [1, 1]} : vector<8x24xf32> to vector<8x16xf32>
    %32 = vector.extract_strided_slice %23 {offsets = [0, 8], sizes = [8, 16], strides = [1, 1]} : vector<8x24xf32> to vector<8x16xf32>
    %33 = tpu.concatenate %24, %25, %26, %27, %28, %29, %30, %31, %32 in 0 : vector<8x16xf32>, vector<8x16xf32>, vector<8x16xf32>, vector<8x16xf32>, vector<8x16xf32>, vector<8x16xf32>, vector<8x16xf32>, vector<8x16xf32>, vector<8x16xf32> -> vector<72x16xf32>
    %34 = arith.truncf %33 : vector<72x16xf32> to vector<72x16xbf16>
    %c0_9 = arith.constant 0 : index
    %c0_10 = arith.constant 0 : index
    %35 = vector.load %arg5[%c0_9, %c0_10] : memref<32x72xbf16, #tpu.memory_space<vmem>>, vector<32x72xbf16>
    %cst_11 = arith.constant dense<0.000000e+00> : vector<32x16xf32>
    %36 = tpu.matmul %35, %34, %cst_11 {dimension_numbers = #tpu.dot_dimension_numbers<[1], [0], [0], [1], [0, 0, 1, 1], [], []>} : vector<32x72xbf16>, vector<72x16xbf16>, vector<32x16xf32> -> vector<32x16xf32>
    %c0_12 = arith.constant 0 : index
    %c0_13 = arith.constant 0 : index
    %37 = vector.load %arg6[%c0_12, %c0_13] : memref<32x1xf32, #tpu.memory_space<vmem>>, vector<32x1xf32>
    %38 = vector.broadcast %37 : vector<32x1xf32> to vector<32x16xf32>
    %39 = arith.addf %36, %38 : vector<32x16xf32>
    %cst_14 = arith.constant 0.000000e+00 : f32
    %40 = vector.broadcast %cst_14 : f32 to vector<32x16xf32>
    %41 = arith.maximumf %39, %40 : vector<32x16xf32>
    %42 = arith.truncf %41 : vector<32x16xf32> to vector<32x16xbf16>
    %c0_15 = arith.constant 0 : index
    %c0_16 = arith.constant 0 : index
    %43 = vector.load %arg10[%c0_15, %c0_16] : memref<32x16xbf16, #tpu.memory_space<vmem>>, vector<32x16xbf16>
    tpu.vector_store %arg10[%c0_15, %c0_16], %42 {strides = array<i32>} : memref<32x16xbf16, #tpu.memory_space<vmem>>, vector<32x16xbf16>,
    %c0_17 = arith.constant 0 : index
    %c0_18 = arith.constant 0 : index
    %44 = vector.load %arg7[%c0_17, %c0_18] : memref<8x32xbf16, #tpu.memory_space<vmem>>, vector<8x32xbf16>
    %c0_19 = arith.constant 0 : index
    %c0_20 = arith.constant 0 : index
    %45 = vector.load %arg10[%c0_19, %c0_20] : memref<32x16xbf16, #tpu.memory_space<vmem>>, vector<32x16xbf16>
    %cst_21 = arith.constant dense<0.000000e+00> : vector<8x16xf32>
    %46 = tpu.matmul %44, %45, %cst_21 {dimension_numbers = #tpu.dot_dimension_numbers<[1], [0], [0], [1], [0, 0, 1, 1], [], []>} : vector<8x32xbf16>, vector<32x16xbf16>, vector<8x16xf32> -> vector<8x16xf32>
    %c0_22 = arith.constant 0 : index
    %c0_23 = arith.constant 0 : index
    %47 = vector.load %arg8[%c0_22, %c0_23] : memref<8x1xf32, #tpu.memory_space<vmem>>, vector<8x1xf32>
    %48 = vector.broadcast %47 : vector<8x1xf32> to vector<8x16xf32>
    %49 = arith.addf %46, %48 : vector<8x16xf32>
    %c0_24 = arith.constant 0 : index
    %c0_25 = arith.constant 0 : index
    %c0_26 = arith.constant 0 : index
    %50 = vector.load %arg9[%c0_24, %c0_25, %c0_26] : memref<1x8x16xf32, #tpu.memory_space<vmem>>, vector<1x8x16xf32>
    %51 = vector.shape_cast %50 : vector<1x8x16xf32> to vector<8x16xf32>
    %52 = vector.shape_cast %49 : vector<8x16xf32> to vector<1x8x16xf32>
    tpu.vector_store %arg9[%c0_24, %c0_25, %c0_26], %52 {strides = array<i32>} : memref<1x8x16xf32, #tpu.memory_space<vmem>>, vector<1x8x16xf32>,
    return
  }
  func.func @transform_0(%arg0: i32, %arg1: i32) -> (i32, i32, i32) {
    %c1_i32 = arith.constant 1 : i32
    %0 = arith.subi %arg1, %c1_i32 : i32
    %c0_i32 = arith.constant 0 : i32
    %1 = arith.maxsi %0, %c0_i32 : i32
    %c0_i32_0 = arith.constant 0 : i32
    %c0_i32_1 = arith.constant 0 : i32
    return %arg0, %c0_i32_0, %1 : i32, i32, i32
  }
  func.func @transform_1(%arg0: i32, %arg1: i32) -> (i32, i32, i32) {
    %c0_i32 = arith.constant 0 : i32
    %c0_i32_0 = arith.constant 0 : i32
    return %arg0, %c0_i32, %arg1 : i32, i32, i32
  }
  func.func @transform_2(%arg0: i32, %arg1: i32) -> (i32, i32, i32) {
    %c1_i32 = arith.constant 1 : i32
    %0 = arith.addi %arg1, %c1_i32 : i32
    %c0_i32 = arith.constant 0 : i32
    %1 = arith.minsi %0, %c0_i32 : i32
    %c0_i32_0 = arith.constant 0 : i32
    %c0_i32_1 = arith.constant 0 : i32
    return %arg0, %c0_i32_0, %1 : i32, i32, i32
  }
  func.func @transform_3(%arg0: i32, %arg1: i32) -> (i32, i32) {
    %c0_i32 = arith.constant 0 : i32
    %c0_i32_0 = arith.constant 0 : i32
    %c0_i32_1 = arith.constant 0 : i32
    return %c0_i32, %c0_i32_0 : i32, i32
  }
  func.func @transform_4(%arg0: i32, %arg1: i32) -> (i32, i32) {
    %c0_i32 = arith.constant 0 : i32
    %c0_i32_0 = arith.constant 0 : i32
    %c0_i32_1 = arith.constant 0 : i32
    return %c0_i32, %c0_i32_0 : i32, i32
  }
  func.func @transform_5(%arg0: i32, %arg1: i32) -> (i32, i32) {
    %c0_i32 = arith.constant 0 : i32
    %c0_i32_0 = arith.constant 0 : i32
    %c0_i32_1 = arith.constant 0 : i32
    return %c0_i32, %c0_i32_0 : i32, i32
  }
  func.func @transform_6(%arg0: i32, %arg1: i32) -> (i32, i32) {
    %c0_i32 = arith.constant 0 : i32
    %c0_i32_0 = arith.constant 0 : i32
    %c0_i32_1 = arith.constant 0 : i32
    return %c0_i32, %c0_i32_0 : i32, i32
  }
  func.func @transform_7(%arg0: i32, %arg1: i32) -> (i32, i32, i32) {
    %c0_i32 = arith.constant 0 : i32
    %c0_i32_0 = arith.constant 0 : i32
    return %arg0, %c0_i32, %arg1 : i32, i32, i32
  }
}

</mosaic_0001>

<llo_original>
// kernel: tpu_custom_call.1
$region0: #{tpu_custom_call.1}
  #allocation0 [shape = 'u32[]', space=smem, size = 0x4, offset = 0x4, fixed_abs, tag = 'smem constant byte address 0x4 - core index']
  #allocation1 [shape = 'u32[72,128]{1,0:T(1,128)}', space=vmem, size = 0x9000, scoped, tag = 'internal scratch']
  #allocation2 [shape = 'bf16[32,16]{1,0:T(8,128)(2,1)}', space=vmem, size = 0x2000, scoped, tag = 'scratch operand']
  %s0 = inlined_call_operand.vmem [shape: bf16[2,8,16], index: 0, kind: input, shape index: {}]
  %s1 = inlined_call_operand.vmem [shape: bf16[2,8,16], index: 1, kind: input, shape index: {}]
  %s2 = inlined_call_operand.vmem [shape: bf16[2,8,16], index: 2, kind: input, shape index: {}]
  %s3 = inlined_call_operand.vmem [shape: bf16[32,72], index: 3, kind: input, shape index: {}]
  %s4 = inlined_call_operand.vmem [shape: f32[32,1], index: 4, kind: input, shape index: {}]
  %s5 = inlined_call_operand.hbm [shape: bf16[8,32], index: 5, kind: input, shape index: {}]
  %s6 = inlined_call_operand.vmem [shape: f32[8,1], index: 6, kind: input, shape index: {}]
  %s7 = inlined_call_operand.hbm [shape: f32[2,8,16], index: 7, kind: output, shape index: {}]
  %s8 = sld [smem:[#allocation0]]
  $region65: #{tpu_custom_call.1} parent=0
    _
  %s10 = ssub.s32 1, %s8
  %s11 = scalar_select 0, %s10, %s8
  $region1: #{tpu_custom_call.1} parent=0
    #allocation3 [shape = 'u8[2048]{0}', space=vmem, size = 0x800, scoped, tag = 'input window, operand 5, single buffered']
    #allocation4 [shape = 's32[2]{0}', space=sflag, size = 0x8, scoped, tag = 'scoped memory for tpu_custom_call.1']
    #allocation5 [shape = 's32[2]{0}', space=sflag, size = 0x8, scoped, tag = 'scoped memory for tpu_custom_call.1']
    #allocation6 [shape = 'u8[8192]{0}', space=vmem, size = 0x2000, scoped, tag = 'output window, operand 0']
    %12 = vsyncpa [#allocation4], 0
    %13 = vsyncpa [#allocation5], 0
    %s14 = scalar_lea.sflag [#allocation5], 1
    %15 = vsyncpa %s14, 0
    loop: start=0, step=1, limit=4
    $region2: #{tpu_custom_call.1} parent=1 // loop_pre_header
      _
    $region3: #{tpu_custom_call.1} parent=1 // loop_header
      %s17 = sphi 0, %s21
      %p18 = scmp.ge.s32.totalorder %s17, 4
      %s24 = sphi 0, %s36
      %s25 = sphi 0, %s32
      %s26 = sphi 0, %s24
      %s27 = sphi 0, %s25
      %s28 = sphi 0, %s26
      %s29 = sphi 0, %s27
      %s47 = sphi 0, %s49
      %s50 = sphi 0, %s47
      %s51 = sphi 0, %s50
      %s67 = sphi 0, %s51
      %s75 = sphi 0, %s77
      %s78 = sphi 0, %s75
      %s79 = sphi 0, %s78
      %s95 = sphi 0, %s79
      %s109 = sphi 0, %s111
      %s112 = sphi 0, %s109
      %s113 = sphi 0, %s112
      %s129 = sphi 0, %s113
      %s133 = sphi 0, %s133
      %s135 = sphi 0, %s133
      %s136 = sphi 0, %s135
      %s150 = sphi 0, %s136
      %s154 = sphi 0, %s154
      %s156 = sphi 0, %s154
      %s157 = sphi 0, %s156
      %s171 = sphi 0, %s157
      %s175 = sphi 0, %s175
      %s177 = sphi 0, %s175
      %s178 = sphi 0, %s177
      %s192 = sphi 0, %s178
      %s196 = sphi 0, %s196
      %s198 = sphi 0, %s196
      %s199 = sphi 0, %s198
      %s213 = sphi 0, %s199
      %s221 = sphi 0, %s223
      %s224 = sphi 0, %s221
      %s225 = sphi 0, %s224
      %s241 = sphi 0, %s225
    $region4: #{tpu_custom_call.1} parent=1 // loop_header_branch
      %20 = sbr.rel (%p18) target = $region8
    $region5: #{tpu_custom_call.1} parent=1 // loop_body
      %s22 = ssub.s32 %s17, 1
      %s23 = ssub.s32 %s17, 2
      %s30 = sadd.s32 1, %s25
      %p31 = scmp.ge.s32.totalorder %s30, 1
      %s32 = scalar_select %p31, 0, %s30
      %s33 = sadd.s32 1, %s24
      %s34 = scalar_select %p31, %s33, %s24
      %p35 = scmp.ge.s32.totalorder %s34, 2
      %s36 = scalar_select %p35, 0, %s34
      %s37 = ssub.s32 %s25, 1
      %p38 = scmp.gt.s32.totalorder %s37, 0
      %s39 = scalar_select %p38, %s37, 0
      %s40 = ssub.s32 %s32, 1
      %p41 = scmp.gt.s32.totalorder %s40, 0
      %s42 = scalar_select %p41, %s40, 0
      %s43 = ssub.s32 %s24, %s36
      %s44 = ssub.s32 %s39, %s42
      %s45 = sor.u32 %s43, %s44
      %p46 = scmp.eq.s32.totalorder %s45, 0
      %s48 = sadd.s32 %s47, 1
      %s49 = scalar_select %p46, %s47, %s48
      %p52 = pneg %p46
      %p53 = scmp.eq.s32.totalorder %s17, 1
      %p54 = por %p52, %p53
      %p55 = scmp.ne.s32.totalorder %s47, %s50
      %p56 = scmp.eq.s32.totalorder %s17, 0
      %p57 = por %p55, %p56
      %p58 = scmp.ne.s32.totalorder %s47, %s50
      %p59 = scmp.eq.s32.totalorder %s22, 1
      %p60 = por %p58, %p59
      %p61 = scmp.ne.s32.totalorder %s50, %s51
      %p62 = scmp.eq.s32.totalorder %s22, 0
      %p63 = por %p61, %p62
      %p64 = scmp.ne.s32.totalorder %s50, %s51
      %p65 = scmp.eq.s32.totalorder %s23, 1
      %p66 = por %p64, %p65
      %p68 = scmp.ne.s32.totalorder %s51, %s67
      %p69 = scmp.eq.s32.totalorder %s23, 0
      %p70 = por %p68, %p69
      %s71 = ssub.s32 %s24, %s36
      %s72 = ssub.s32 %s25, %s32
      %s73 = sor.u32 %s71, %s72
      %p74 = scmp.eq.s32.totalorder %s73, 0
      %s76 = sadd.s32 %s75, 1
      %s77 = scalar_select %p74, %s75, %s76
      %p80 = pneg %p74
      %p81 = scmp.eq.s32.totalorder %s17, 1
      %p82 = por %p80, %p81
      %p83 = scmp.ne.s32.totalorder %s75, %s78
      %p84 = scmp.eq.s32.totalorder %s17, 0
      %p85 = por %p83, %p84
      %p86 = scmp.ne.s32.totalorder %s75, %s78
      %p87 = scmp.eq.s32.totalorder %s22, 1
      %p88 = por %p86, %p87
      %p89 = scmp.ne.s32.totalorder %s78, %s79
      %p90 = scmp.eq.s32.totalorder %s22, 0
      %p91 = por %p89, %p90
      %p92 = scmp.ne.s32.totalorder %s78, %s79
      %p93 = scmp.eq.s32.totalorder %s23, 1
      %p94 = por %p92, %p93
      %p96 = scmp.ne.s32.totalorder %s79, %s95
      %p97 = scmp.eq.s32.totalorder %s23, 0
      %p98 = por %p96, %p97
      %s99 = sadd.s32 %s25, 1
      %p100 = scmp.lt.s32.totalorder %s99, 0
      %s101 = scalar_select %p100, %s99, 0
      %s102 = sadd.s32 %s32, 1
      %p103 = scmp.lt.s32.totalorder %s102, 0
      %s104 = scalar_select %p103, %s102, 0
      %s105 = ssub.s32 %s24, %s36
      %s106 = ssub.s32 %s101, %s104
      %s107 = sor.u32 %s105, %s106
      %p108 = scmp.eq.s32.totalorder %s107, 0
      %s110 = sadd.s32 %s109, 1
      %s111 = scalar_select %p108, %s109, %s110
      %p114 = pneg %p108
      %p115 = scmp.eq.s32.totalorder %s17, 1
      %p116 = por %p114, %p115
      %p117 = scmp.ne.s32.totalorder %s109, %s112
      %p118 = scmp.eq.s32.totalorder %s17, 0
      %p119 = por %p117, %p118
      %p120 = scmp.ne.s32.totalorder %s109, %s112
      %p121 = scmp.eq.s32.totalorder %s22, 1
      %p122 = por %p120, %p121
      %p123 = scmp.ne.s32.totalorder %s112, %s113
      %p124 = scmp.eq.s32.totalorder %s22, 0
      %p125 = por %p123, %p124
      %p126 = scmp.ne.s32.totalorder %s112, %s113
      %p127 = scmp.eq.s32.totalorder %s23, 1
      %p128 = por %p126, %p127
      %p130 = scmp.ne.s32.totalorder %s113, %s129
      %p131 = scmp.eq.s32.totalorder %s23, 0
      %p132 = por %p130, %p131
      %s134 = sadd.s32 %s133, 1
      %p137 = scmp.eq.s32.totalorder %s17, 1
      %p138 = scmp.ne.s32.totalorder %s133, %s135
      %p139 = scmp.eq.s32.totalorder %s17, 0
      %p140 = por %p138, %p139
      %p141 = scmp.ne.s32.totalorder %s133, %s135
      %p142 = scmp.eq.s32.totalorder %s22, 1
      %p143 = por %p141, %p142
      %p144 = scmp.ne.s32.totalorder %s135, %s136
      %p145 = scmp.eq.s32.totalorder %s22, 0
      %p146 = por %p144, %p145
      %p147 = scmp.ne.s32.totalorder %s135, %s136
      %p148 = scmp.eq.s32.totalorder %s23, 1
      %p149 = por %p147, %p148
      %p151 = scmp.ne.s32.totalorder %s136, %s150
      %p152 = scmp.eq.s32.totalorder %s23, 0
      %p153 = por %p151, %p152
      %s155 = sadd.s32 %s154, 1
      %p158 = scmp.eq.s32.totalorder %s17, 1
      %p159 = scmp.ne.s32.totalorder %s154, %s156
      %p160 = scmp.eq.s32.totalorder %s17, 0
      %p161 = por %p159, %p160
      %p162 = scmp.ne.s32.totalorder %s154, %s156
      %p163 = scmp.eq.s32.totalorder %s22, 1
      %p164 = por %p162, %p163
      %p165 = scmp.ne.s32.totalorder %s156, %s157
      %p166 = scmp.eq.s32.totalorder %s22, 0
      %p167 = por %p165, %p166
      %p168 = scmp.ne.s32.totalorder %s156, %s157
      %p169 = scmp.eq.s32.totalorder %s23, 1
      %p170 = por %p168, %p169
      %p172 = scmp.ne.s32.totalorder %s157, %s171
      %p173 = scmp.eq.s32.totalorder %s23, 0
      %p174 = por %p172, %p173
      %s176 = sadd.s32 %s175, 1
      %p179 = scmp.eq.s32.totalorder %s17, 1
      %p180 = scmp.ne.s32.totalorder %s175, %s177
      %p181 = scmp.eq.s32.totalorder %s17, 0
      %p182 = por %p180, %p181
      %p183 = scmp.ne.s32.totalorder %s175, %s177
      %p184 = scmp.eq.s32.totalorder %s22, 1
      %p185 = por %p183, %p184
      %p186 = scmp.ne.s32.totalorder %s177, %s178
      %p187 = scmp.eq.s32.totalorder %s22, 0
      %p188 = por %p186, %p187
      %p189 = scmp.ne.s32.totalorder %s177, %s178
      %p190 = scmp.eq.s32.totalorder %s23, 1
      %p191 = por %p189, %p190
      %p193 = scmp.ne.s32.totalorder %s178, %s192
      %p194 = scmp.eq.s32.totalorder %s23, 0
      %p195 = por %p193, %p194
      %s197 = sadd.s32 %s196, 1
      %p200 = scmp.eq.s32.totalorder %s17, 1
      %p201 = scmp.ne.s32.totalorder %s196, %s198
      %p202 = scmp.eq.s32.totalorder %s17, 0
      %p203 = por %p201, %p202
      %p204 = scmp.ne.s32.totalorder %s196, %s198
      %p205 = scmp.eq.s32.totalorder %s22, 1
      %p206 = por %p204, %p205
      %p207 = scmp.ne.s32.totalorder %s198, %s199
      %p208 = scmp.eq.s32.totalorder %s22, 0
      %p209 = por %p207, %p208
      %p210 = scmp.ne.s32.totalorder %s198, %s199
      %p211 = scmp.eq.s32.totalorder %s23, 1
      %p212 = por %p210, %p211
      %p214 = scmp.ne.s32.totalorder %s199, %s213
      %p215 = scmp.eq.s32.totalorder %s23, 0
      %p216 = por %p214, %p215
      %s217 = ssub.s32 %s24, %s36
      %s218 = ssub.s32 %s25, %s32
      %s219 = sor.u32 %s217, %s218
      %p220 = scmp.eq.s32.totalorder %s219, 0
      %s222 = sadd.s32 %s221, 1
      %s223 = scalar_select %p220, %s221, %s222
      %p226 = pneg %p220
      %p227 = scmp.eq.s32.totalorder %s17, 1
      %p228 = por %p226, %p227
      %p229 = scmp.ne.s32.totalorder %s221, %s224
      %p230 = scmp.eq.s32.totalorder %s17, 0
      %p231 = por %p229, %p230
      %p232 = scmp.ne.s32.totalorder %s221, %s224
      %p233 = scmp.eq.s32.totalorder %s22, 1
      %p234 = por %p232, %p233
      %p235 = scmp.ne.s32.totalorder %s224, %s225
      %p236 = scmp.eq.s32.totalorder %s22, 0
      %p237 = por %p235, %p236
      %p238 = scmp.ne.s32.totalorder %s224, %s225
      %p239 = scmp.eq.s32.totalorder %s23, 1
      %p240 = por %p238, %p239
      %p242 = scmp.ne.s32.totalorder %s225, %s241
      %p243 = scmp.eq.s32.totalorder %s23, 0
      %p244 = por %p242, %p243
      %p245 = scmp.le.s32.totalorder 1, %s17
      %p246 = scmp.lt.s32.totalorder %s17, 3
      %p247 = pnand %p245, %p246
      %p248 = pneg %p247
      // Predicated region
      $region9: #{tpu_custom_call.1} parent=5 // pred_check
        _
      $region10: #{tpu_custom_call.1} parent=5 // pred_check_branch
        %250 = sbr.rel (%p247) target = $region12
      $region11: #{tpu_custom_call.1} parent=5 // pred_region
        %s251 = ssub.s32 %s17, 1
        // Predicated region
        $region13: #{tpu_custom_call.1} parent=11 // pred_check
          %p252 = pneg %p146
        $region14: #{tpu_custom_call.1} parent=11 // pred_check_branch
          %254 = sbr.rel (%p252) target = $region16
        $region15: #{tpu_custom_call.1} parent=11 // pred_region
          _
        $region16: #{tpu_custom_call.1} parent=11 // pred_fallthru
          _
        // Predicated region
        $region17: #{tpu_custom_call.1} parent=11 // pred_check
          %p255 = pneg %p167
        $region18: #{tpu_custom_call.1} parent=11 // pred_check_branch
          %257 = sbr.rel (%p255) target = $region20
        $region19: #{tpu_custom_call.1} parent=11 // pred_region
          _
        $region20: #{tpu_custom_call.1} parent=11 // pred_fallthru
          _
        // Predicated region
        $region21: #{tpu_custom_call.1} parent=11 // pred_check
          %p258 = pneg %p188
        $region22: #{tpu_custom_call.1} parent=11 // pred_check_branch
          %260 = sbr.rel (%p258) target = $region24
        $region23: #{tpu_custom_call.1} parent=11 // pred_region
          %262 = vsyncadd [#allocation4], 0
          %s264 = sshll.u32 %s5, 4
          %s265 = int_to_ptr.hbm [resolvable:$true] %s264
          %s266 = sshll.u32 [#allocation3], 4
          %s267 = int_to_ptr.vmem [resolvable:$true] %s266
          %269 = dma.hbm_to_vmem [thread:$0]  %s265, 64, %s267, [#allocation4]
        $region24: #{tpu_custom_call.1} parent=11 // pred_fallthru
          _
        // Predicated region
        $region25: #{tpu_custom_call.1} parent=11 // pred_check
          %p270 = pneg %p209
        $region26: #{tpu_custom_call.1} parent=11 // pred_check_branch
          %272 = sbr.rel (%p270) target = $region28
        $region27: #{tpu_custom_call.1} parent=11 // pred_region
          _
        $region28: #{tpu_custom_call.1} parent=11 // pred_fallthru
          _
      $region12: #{tpu_custom_call.1} parent=5 // pred_fallthru
        _
      %p273 = scmp.lt.s32.totalorder %s17, 2
      // Predicated region
      $region29: #{tpu_custom_call.1} parent=5 // pred_check
        %p274 = pneg %p273
      $region30: #{tpu_custom_call.1} parent=5 // pred_check_branch
        %276 = sbr.rel (%p274) target = $region32
      $region31: #{tpu_custom_call.1} parent=5 // pred_region
        // Predicated region
        $region33: #{tpu_custom_call.1} parent=31 // pred_check
          %p277 = pneg %p57
        $region34: #{tpu_custom_call.1} parent=31 // pred_check_branch
          %279 = sbr.rel (%p277) target = $region36
        $region35: #{tpu_custom_call.1} parent=31 // pred_region
          %s280 = ssub.s32 %s25, 1
          %p281 = scmp.gt.s32.totalorder %s280, 0
          %s282 = scalar_select %p281, %s280, 0
          %p283 = scmp.lt.s32.totalorder %s24, 1
          %s284 = scalar_select %p283, %s24, 1
          %p285 = scmp.lt.s32.totalorder %s282, 0
          %s286 = scalar_select %p285, %s282, 0
          %s287 = sadd.s32 %s286, %s284
          %s288 = smul.addr %s287, 4
          %s289 = scalar_lea.vmem %s0, %s288
          %s290 = ssub.s32 %s25, 1
          %p291 = scmp.gt.s32.totalorder %s290, 0
          %s292 = scalar_select %p291, %s290, 0
        $region36: #{tpu_custom_call.1} parent=31 // pred_fallthru
          _
        // Predicated region
        $region37: #{tpu_custom_call.1} parent=31 // pred_check
          %p293 = pneg %p85
        $region38: #{tpu_custom_call.1} parent=31 // pred_check_branch
          %295 = sbr.rel (%p293) target = $region40
        $region39: #{tpu_custom_call.1} parent=31 // pred_region
          %p296 = scmp.lt.s32.totalorder %s24, 1
          %s297 = scalar_select %p296, %s24, 1
          %p298 = scmp.lt.s32.totalorder %s25, 0
          %s299 = scalar_select %p298, %s25, 0
          %s300 = sadd.s32 %s299, %s297
          %s301 = smul.addr %s300, 4
          %s302 = scalar_lea.vmem %s1, %s301
        $region40: #{tpu_custom_call.1} parent=31 // pred_fallthru
          _
        // Predicated region
        $region41: #{tpu_custom_call.1} parent=31 // pred_check
          %p303 = pneg %p119
        $region42: #{tpu_custom_call.1} parent=31 // pred_check_branch
          %305 = sbr.rel (%p303) target = $region44
        $region43: #{tpu_custom_call.1} parent=31 // pred_region
          %s306 = sadd.s32 %s25, 1
          %p307 = scmp.lt.s32.totalorder %s306, 0
          %s308 = scalar_select %p307, %s306, 0
          %p309 = scmp.lt.s32.totalorder %s24, 1
          %s310 = scalar_select %p309, %s24, 1
          %p311 = scmp.lt.s32.totalorder %s308, 0
          %s312 = scalar_select %p311, %s308, 0
          %s313 = sadd.s32 %s312, %s310
          %s314 = smul.addr %s313, 4
          %s315 = scalar_lea.vmem %s2, %s314
          %s316 = sadd.s32 %s25, 1
          %p317 = scmp.lt.s32.totalorder %s316, 0
          %s318 = scalar_select %p317, %s316, 0
        $region44: #{tpu_custom_call.1} parent=31 // pred_fallthru
          _
      $region32: #{tpu_custom_call.1} parent=5 // pred_fallthru
        _
      %p319 = scmp.le.s32.totalorder 1, %s17
      %p320 = scmp.lt.s32.totalorder %s17, 3
      %p321 = pnand %p319, %p320
      %p322 = pneg %p321
      // Predicated region
      $region45: #{tpu_custom_call.1} parent=5 // pred_check
        _
      $region46: #{tpu_custom_call.1} parent=5 // pred_check_branch
        %324 = sbr.rel (%p321) target = $region48
      $region47: #{tpu_custom_call.1} parent=5 // pred_region
        %s325 = ssub.s32 %s17, 1
        // Predicated region
        $region49: #{tpu_custom_call.1} parent=47 // pred_check
          %p326 = pneg %p188
        $region50: #{tpu_custom_call.1} parent=47 // pred_check_branch
          %328 = sbr.rel (%p326) target = $region52
        $region51: #{tpu_custom_call.1} parent=47 // pred_region
          %330 = dma.done [#allocation4], 64
        $region52: #{tpu_custom_call.1} parent=47 // pred_fallthru
          _
        %s331 = ssub.s32 %s27, 1
        %p332 = scmp.gt.s32.totalorder %s331, 0
        %s333 = scalar_select %p332, %s331, 0
        %p334 = scmp.lt.s32.totalorder %s26, 1
        %s335 = scalar_select %p334, %s26, 1
        %p336 = scmp.lt.s32.totalorder %s333, 0
        %s337 = scalar_select %p336, %s333, 0
        %s338 = sadd.s32 %s337, %s335
        %s339 = smul.addr %s338, 4
        %s340 = scalar_lea.vmem %s0, %s339
        %p341 = pneg %p63
        %p342 = pneg %p60
        %p343 = scmp.lt.s32.totalorder %s26, 1
        %s344 = scalar_select %p343, %s26, 1
        %p345 = scmp.lt.s32.totalorder %s27, 0
        %s346 = scalar_select %p345, %s27, 0
        %s347 = sadd.s32 %s346, %s344
        %s348 = smul.addr %s347, 4
        %s349 = scalar_lea.vmem %s1, %s348
        %p350 = pneg %p91
        %p351 = pneg %p88
        %s352 = sadd.s32 %s27, 1
        %p353 = scmp.lt.s32.totalorder %s352, 0
        %s354 = scalar_select %p353, %s352, 0
        %p355 = scmp.lt.s32.totalorder %s26, 1
        %s356 = scalar_select %p355, %s26, 1
        %p357 = scmp.lt.s32.totalorder %s354, 0
        %s358 = scalar_select %p357, %s354, 0
        %s359 = sadd.s32 %s358, %s356
        %s360 = smul.addr %s359, 4
        %s361 = scalar_lea.vmem %s2, %s360
        %p362 = pneg %p125
        %p363 = pneg %p122
        %p364 = pneg %p146
        %p365 = pneg %p143
        %p366 = pneg %p167
        %p367 = pneg %p164
        %p368 = pneg %p188
        %p369 = pneg %p185
        %p370 = pneg %p209
        %p371 = pneg %p206
        %p372 = pneg %p237
        %p373 = pneg %p234
        %s374 = sand.u32 %s224, 1
        %s375 = scalar_lea.sflag [#allocation5], %s374
        %s376 = sand.u32 %s224, 1
        %s377 = smul.addr %s376, 8
        %s378 = scalar_lea.vmem [#allocation6], %s377
        %s379 = ssub.s32 %s27, 1
        %p380 = scmp.gt.s32.totalorder %s379, 0
        %s381 = scalar_select %p380, %s379, 0
        %p382 = scmp.lt.s32.totalorder %s26, 1
        %s383 = scalar_select %p382, %s26, 1
        %p384 = scmp.lt.s32.totalorder %s381, 0
        %s385 = scalar_select %p384, %s381, 0
        %s386 = sadd.s32 %s385, %s383
        %s387 = smul.addr %s386, 4
        %s388 = scalar_lea.vmem %s0, %s387
        %s389 = ssub.s32 %s27, 1
        %p390 = scmp.gt.s32.totalorder %s389, 0
        %s391 = scalar_select %p390, %s389, 0
        %p392 = scmp.lt.s32.totalorder %s26, 1
        %s393 = scalar_select %p392, %s26, 1
        %p394 = scmp.lt.s32.totalorder %s27, 0
        %s395 = scalar_select %p394, %s27, 0
        %s396 = sadd.s32 %s395, %s393
        %s397 = smul.addr %s396, 4
        %s398 = scalar_lea.vmem %s1, %s397
        %s399 = sadd.s32 %s27, 1
        %p400 = scmp.lt.s32.totalorder %s399, 0
        %s401 = scalar_select %p400, %s399, 0
        %p402 = scmp.lt.s32.totalorder %s26, 1
        %s403 = scalar_select %p402, %s26, 1
        %p404 = scmp.lt.s32.totalorder %s401, 0
        %s405 = scalar_select %p404, %s401, 0
        %s406 = sadd.s32 %s405, %s403
        %s407 = smul.addr %s406, 4
        %s408 = scalar_lea.vmem %s2, %s407
        %s409 = sadd.s32 %s27, 1
        %p410 = scmp.lt.s32.totalorder %s409, 0
        %s411 = scalar_select %p410, %s409, 0
        %v413 = vld [vmem:[%s388] sm:$0xf]
        %v414 = vunpack.c.l.bf16 %v413
        %v415 = vld [vmem:[%s398] sm:$0xf]
        %v416 = vunpack.c.l.bf16 %v415
        %v417 = vld [vmem:[%s408] sm:$0xf]
        %v418 = vunpack.c.l.bf16 %v417
        %420 = vrot.lane.b32.xlu0 %v414, 116
        %v421 = vpop.permute.xlu0 %420
        %424 = vrot.lane.b32.xlu0 %v416, 4
        %v425 = vpop.permute.xlu0 %424
        %428 = vrot.lane.b32.xlu0 %v418, 20
        %v429 = vpop.permute.xlu0 %428
        %vm431 = vcmask 31744
        %v432 = vsel %vm431, %v421, %v425
        %vm433 = vcmask 162816
        %v434 = vsel %vm433, %v432, %v429
        %s435 = smul.u32 %s27, 16
        %s436 = ssub.s32 %s435, 4
        %v437 = vlaneseq
        %v438 = vand.u32 %v437, 127
        %v439 = vstv %s436
        %v440 = vadd.s32 %v439, %v438
        %vm441 = vcmp.ge.s32.totalorder %v440, 0
        %vm442 = vcmp.lt.s32.totalorder %v440, 16
        %vm443 = vmand %vm441, %vm442
        %v444 = vsel %vm443, %v434, 0.0
        %446 = vrot.lane.b32.xlu0 %v444, 127
        %v447 = vpop.permute.xlu0 %446
        %449 = vrot.lane.b32.xlu0 %v444, 126
        %v450 = vpop.permute.xlu0 %449
        %452 = vrot.lane.b32.xlu0 %v444, 125
        %v453 = vpop.permute.xlu0 %452
        %455 = vrot.lane.b32.xlu0 %v444, 124
        %v456 = vpop.permute.xlu0 %455
        %458 = vrot.lane.b32.xlu0 %v444, 123
        %v459 = vpop.permute.xlu0 %458
        %461 = vrot.lane.b32.xlu0 %v444, 122
        %v462 = vpop.permute.xlu0 %461
        %464 = vrot.lane.b32.xlu0 %v444, 121
        %v465 = vpop.permute.xlu0 %464
        %467 = vrot.lane.b32.xlu0 %v444, 120
        %v468 = vpop.permute.xlu0 %467
        %v470 = vpack.c.bf16 %v447, %v444
        %v471 = vpack.c.bf16 %v453, %v450
        %v472 = vpack.c.bf16 %v459, %v456
        %v473 = vpack.c.bf16 %v465, %v462
        %v474 = vpack.c.bf16 %v468, %v468
        %v475 = vld [vmem:[%s3] sm:$0xf]
        %v476 = vld [vmem:[%s3 + $0x4] sm:$0xf]
        %v477 = vld [vmem:[%s3 + $0x8] sm:$0xf]
        %v478 = vld [vmem:[%s3 + $0xc] sm:$0xf]
        %v479 = vld [vmem:[%s4] sm:$0xff]
        %v480 = vld [vmem:[%s4 + $0x8] sm:$0xff]
        %v481 = vld [vmem:[%s4 + $0x10] sm:$0xff]
        %v482 = vld [vmem:[%s4 + $0x18] sm:$0xff]
        %484 = vset.pattern.permute.xlu0 0
        %485 = vperm.xlu0 %484, %v479
        %v486 = vpop.permute.xlu0 %485
        %489 = vset.pattern.permute.xlu0 0
        %490 = vperm.xlu0 %489, %v480
        %v491 = vpop.permute.xlu0 %490
        %494 = vset.pattern.permute.xlu0 0
        %495 = vperm.xlu0 %494, %v481
        %v496 = vpop.permute.xlu0 %495
        %499 = vset.pattern.permute.xlu0 0
        %500 = vperm.xlu0 %499, %v482
        %v501 = vpop.permute.xlu0 %500
        %v507 = vunpack.c.l.b16 %v475
        %v508 = vunpack.c.l.b16 %v476
        %v509 = vunpack.c.l.b16 %v477
        %v510 = vunpack.c.l.b16 %v478
        %v511 = vpack.c.b16 %v508, %v507
        %v512 = vpack.c.b16 %v510, %v509
        %vm513 = vcmask 588800
        %v515 = vsel %vm513, %v511, 0
        %v518 = vsel %vm513, %v512, 0
        %vm520 = vcmask 1043456
        %v522 = vsel %vm520, %v474, 0
        %524 = vmatpush.bf16.msra.mxu0 0
        %525 = vmatpush.bf16.msra.mxu0 0
        %526 = vmatpush.bf16.msra.mxu0 0
        %527 = vmatpush.bf16.msra.mxu0 %v522
        %528 = vmatpush.bf16.msra.mxu0 %v473
        %529 = vmatpush.bf16.msra.mxu0 %v472
        %530 = vmatpush.bf16.msra.mxu0 %v471
        %531 = vmatpush.bf16.msra.mxu0 %v470
        %532 = vmatmul.bf16.gmra.mxu0 %v515
        %v533 = vpop.f32.mrf.mxu0
        %v534 = vadd.f32 %v486, %v533
        %v535 = vpop.f32.mrf.mxu0
        %v536 = vadd.f32 %v491, %v535
        %537 = vmatmul.bf16.gmra.mxu0 %v518
        %v538 = vpop.f32.mrf.mxu0
        %v539 = vadd.f32 %v496, %v538
        %v540 = vpop.f32.mrf.mxu0
        %v541 = vadd.f32 %v501, %v540
        %542 = vdwg.mxu0
        %v543 = vmax.f32 %v534, 0.0
        %v544 = vmax.f32 %v536, 0.0
        %v545 = vmax.f32 %v539, 0.0
        %v546 = vmax.f32 %v541, 0.0
        %v547 = vpack.c.bf16 %v543, %v543
        %v548 = vpack.c.bf16 %v544, %v544
        %v549 = vpack.c.bf16 %v545, %v545
        %v550 = vpack.c.bf16 %v546, %v546
        %vm551 = vcmask 125952
        %552 = vst.msk [vmem:[#allocation2] sm:$0xf] %vm551, %v547
        %553 = vst.msk [vmem:[#allocation2 + $0x4] sm:$0xf] %vm551, %v548
        %554 = vst.msk [vmem:[#allocation2 + $0x8] sm:$0xf] %vm551, %v549
        %555 = vst.msk [vmem:[#allocation2 + $0xc] sm:$0xf] %vm551, %v550
        %v556 = vld [vmem:[#allocation3] sm:$0xf]
        %v557 = vld [vmem:[#allocation2] sm:$0xf]
        %v558 = vld [vmem:[#allocation2 + $0x4] sm:$0xf]
        %v559 = vld [vmem:[#allocation2 + $0x8] sm:$0xf]
        %v560 = vld [vmem:[#allocation2 + $0xc] sm:$0xf]
        %v561 = vld [vmem:[%s6] sm:$0xff]
        %563 = vset.pattern.permute.xlu0 0
        %564 = vperm.xlu0 %563, %v561
        %v565 = vpop.permute.xlu0 %564
        %v571 = vunpack.c.l.b16 %v557
        %v572 = vunpack.c.l.b16 %v558
        %v573 = vunpack.c.l.b16 %v559
        %v574 = vunpack.c.l.b16 %v560
        %v575 = vpack.c.b16 %v572, %v571
        %v576 = vpack.c.b16 %v574, %v573
        %vm579 = vcmask 261120
        %v581 = vsel %vm579, %v556, 0
        %583 = vmatpush.bf16.msra.mxu0 0
        %584 = vmatpush.bf16.msra.mxu0 0
        %585 = vmatpush.bf16.msra.mxu0 0
        %586 = vmatpush.bf16.msra.mxu0 0
        %587 = vmatpush.bf16.msra.mxu0 0
        %588 = vmatpush.bf16.msra.mxu0 0
        %589 = vmatpush.bf16.msra.mxu0 %v576
        %590 = vmatpush.bf16.msra.mxu0 %v575
        %591 = vmatmul.bf16.gmra.mxu0 %v581
        %v592 = vpop.f32.mrf.mxu0
        %v593 = vadd.f32 %v565, %v592
        %v594 = vpop.f32.mrf.mxu0
        %595 = vdwg.mxu0
        %vm596 = vcmask 130048
        %597 = vst.msk [vmem:[%s378] sm:$0xff] %vm596, %v593
        %s598 = sand.u32 %s224, 1
        %s599 = scalar_lea.sflag [#allocation5], %s598
        %s600 = sand.u32 %s224, 1
        %s601 = smul.addr %s600, 8
        %s602 = scalar_lea.vmem [#allocation6], %s601
        // Predicated region
        $region53: #{tpu_custom_call.1} parent=47 // pred_check
          %p603 = pneg %p234
        $region54: #{tpu_custom_call.1} parent=47 // pred_check_branch
          %605 = sbr.rel (%p603) target = $region56
        $region55: #{tpu_custom_call.1} parent=47 // pred_region
          %607 = vsyncadd %s599, 0
          %s608 = sadd.s32 %s27, %s26
          %s609 = smul.addr %s608, 8
          %s610 = scalar_lea.hbm %s7, %s609
          %s612 = sshll.u32 %s602, 4
          %s613 = int_to_ptr.vmem [resolvable:$true] %s612
          %s614 = sshll.u32 %s610, 4
          %s615 = int_to_ptr.hbm [resolvable:$true] %s614
          %617 = dma.vmem_to_hbm [thread:$0]  %s613, 128, %s615, %s599
        $region56: #{tpu_custom_call.1} parent=47 // pred_fallthru
          _
      $region48: #{tpu_custom_call.1} parent=5 // pred_fallthru
        _
      %p618 = scmp.le.s32.totalorder 2, %s17
      // Predicated region
      $region57: #{tpu_custom_call.1} parent=5 // pred_check
        %p619 = pneg %p618
      $region58: #{tpu_custom_call.1} parent=5 // pred_check_branch
        %621 = sbr.rel (%p619) target = $region60
      $region59: #{tpu_custom_call.1} parent=5 // pred_region
        %s622 = ssub.s32 %s17, 2
        // Predicated region
        $region61: #{tpu_custom_call.1} parent=59 // pred_check
          %p623 = pneg %p240
        $region62: #{tpu_custom_call.1} parent=59 // pred_check_branch
          %625 = sbr.rel (%p623) target = $region64
        $region63: #{tpu_custom_call.1} parent=59 // pred_region
          %s626 = sand.u32 %s225, 1
          %s627 = scalar_lea.sflag [#allocation5], %s626
          %s628 = sand.u32 %s225, 1
          %s629 = smul.addr %s628, 8
          %s630 = scalar_lea.vmem [#allocation6], %s629
          %632 = dma.done %s627, 128
        $region64: #{tpu_custom_call.1} parent=59 // pred_fallthru
          _
      $region60: #{tpu_custom_call.1} parent=5 // pred_fallthru
        _
    $region6: #{tpu_custom_call.1} parent=1 // loop_footer
      %s21 = sadd.s32 1, %s17
    $region7: #{tpu_custom_call.1} parent=1 // loop_footer_branch
      %16 = sbr.rel target = $region3
    $region8: #{tpu_custom_call.1} parent=1 // loop_exit
      _
    %633 = vsyncpa [#allocation4], 1
    %s634 = scalar_lea.sflag [#allocation4], 1
    %635 = vsyncpa %s634, 1
    %636 = vsyncpa [#allocation5], 1
    %s637 = scalar_lea.sflag [#allocation5], 1
    %638 = vsyncpa %s637, 1

</llo_original>
